<compile_context>
chip_gen: v7x
topology: tpu7x:2x2x1
jax: 0.10.0
libtpu: 0.0.40
codegen_flags: <defaults>
</compile_context>

<pallas_src>
import jax
import jax.numpy as jnp
from jax.experimental import pallas as pl
from jax.experimental.pallas import tpu as pltpu


def _round_up(n, m):
    return ((n + m - 1) // m) * m


def mlp_kernel(x_ref,
               w1_ref, b1_ref,
               w2_ref, b2_ref,
               w3_ref, b3_ref,
               w4_ref, b4_ref,
               o_ref):
    """One batch tile through 3x (Linear + ReLU) on the MXU (bf16 in, f32 acc)
    and a VPU/XLU final Linear(32->1) + sigmoid.  All ops are row-local."""
    # Layer 1: Linear(D -> 128) + ReLU
    h = jnp.dot(x_ref[...], w1_ref[...], preferred_element_type=jnp.float32)
    h = jnp.maximum(h + b1_ref[...], 0.0)
    # Layer 2: Linear(128 -> 64) + ReLU
    h = jnp.dot(h.astype(jnp.bfloat16), w2_ref[...],
                preferred_element_type=jnp.float32)
    h = jnp.maximum(h + b2_ref[...], 0.0)
    # Layer 3: Linear(64 -> 32) + ReLU
    h = jnp.dot(h.astype(jnp.bfloat16), w3_ref[...],
                preferred_element_type=jnp.float32)
    h = jnp.maximum(h + b3_ref[...], 0.0)
    # Output layer: Linear(32 -> 1) as broadcast-mul + lane reduce (keeps the
    # MXU free of a 1-column push), then sigmoid on the EUP.
    z = jnp.sum(h * w4_ref[...], axis=-1, keepdims=True) + b4_ref[...]
    o_ref[...] = jax.nn.sigmoid(z)


def _choose_tile(batch, tile_b):
    # Requested tile, forced to a multiple of 16 (bf16 sublane packing, also a
    # multiple of 8 for the f32 output block) and at least 16.
    tile = _round_up(max(int(tile_b), 16), 16)
    # Never allocate a tile (much) larger than the batch itself.
    tile = min(tile, _round_up(batch, 16))
    # v7x megacore: if a large batch would fit in a single tile, split it so the
    # "parallel" grid axis has >= 2 steps (one per TensorCore).  Harmless on
    # single-core v5e / v6e.
    if batch > 1024 and pl.cdiv(batch, tile) < 2:
        tile = max(512, _round_up(pl.cdiv(batch, 2), 512))
    return tile


def neural_network_forward(x, params, *, tile_b=2048):
    """x: [B, input_size] float32; params: list of (W [in,out] f32, b [1,out] f32)."""
    B, D = x.shape
    (w1, b1), (w2, b2), (w3, b3), (w4, b4) = params
    H1, H2, H3 = w1.shape[1], w2.shape[1], w3.shape[1]

    # bf16 MXU operands; biases / final row-vector weight stay f32.
    x_bf = x.astype(jnp.bfloat16)
    w1_bf = w1.astype(jnp.bfloat16)
    w2_bf = w2.astype(jnp.bfloat16)
    w3_bf = w3.astype(jnp.bfloat16)
    w4_row = w4.reshape(1, -1).astype(jnp.float32)            # (1, 32) VPU path
    b1f, b2f, b3f, b4f = (b.astype(jnp.float32) for b in (b1, b2, b3, b4))

    tile = _choose_tile(B, tile_b)
    grid = (pl.cdiv(B, tile),)
    # NOTE (no-pad invariant): the last grid step may read x rows past B
    # (unspecified values).  This is correct only because every op here is
    # row-local and Pallas drops out-of-range output rows.  If a row-coupled op
    # (batch norm, row softmax, ...) is ever added, reinstate an explicit pad.

    def full_spec(a):
        nd = a.ndim
        return pl.BlockSpec(a.shape, lambda i, _nd=nd: (0,) * _nd)

    in_specs = [
        pl.BlockSpec((tile, D), lambda i: (i, 0)),             # x: tiled over batch
        full_spec(w1_bf), full_spec(b1f),                      # weights: resident
        full_spec(w2_bf), full_spec(b2f),
        full_spec(w3_bf), full_spec(b3f),
        full_spec(w4_row), full_spec(b4f),
    ]
    out_spec = pl.BlockSpec((tile, 1), lambda i: (i, 0))       # last dim == full dim

    params_bytes = sum(int(a.size) * a.dtype.itemsize
                       for a in (w1_bf, b1f, w2_bf, b2f, w3_bf, b3f, w4_row, b4f))
    # VMEM footprint: double-buffered x/out tiles + f32 intermediates + weights
    # (double-buffered by default).  Cap at v7x's 64 MiB physical VMEM.
    per_row_bytes = 2 * D * 2 + 2 * 1 * 4 + (H1 + H2 + H3 + 1) * 4
    vmem_need = tile * per_row_bytes + 2 * params_bytes
    vmem_limit = int(min(64 * 1024 * 1024, max(16 * 1024 * 1024, 2 * vmem_need)))

    n_rows = grid[0] * tile
    flops = 2 * n_rows * (D * H1 + H1 * H2 + H2 * H3 + H3 * 1)
    bytes_accessed = B * D * 2 + B * 4 + params_bytes          # no host-side pad

    out = pl.pallas_call(
        mlp_kernel,
        out_shape=jax.ShapeDtypeStruct((B, 1), jnp.float32),
        grid=grid,
        in_specs=in_specs,
        out_specs=out_spec,
        compiler_params=pltpu.CompilerParams(
            dimension_semantics=("parallel",),
            vmem_limit_bytes=vmem_limit,
        ),
        cost_estimate=pl.CostEstimate(
            flops=flops,
            transcendentals=n_rows,
            bytes_accessed=bytes_accessed,
        ),
    )(x_bf, w1_bf, b1f, w2_bf, b2f, w3_bf, b3f, w4_row, b4f)

    return out


def init_params(key, input_size, hidden_sizes, output_size):
    """Deterministic init mimicking nn.Linear's U(-1/sqrt(fan_in), 1/sqrt(fan_in))."""
    dims = [input_size] + list(hidden_sizes) + [output_size]
    params = []
    for i in range(len(dims) - 1):
        fan_in, fan_out = dims[i], dims[i + 1]
        key, kw, kb = jax.random.split(key, 3)
        bound = 1.0 / jnp.sqrt(jnp.float32(fan_in))
        # Stored as [in, out] (transpose of PyTorch's [out, in] weight).
        w = jax.random.uniform(kw, (fan_in, fan_out), jnp.float32,
                               minval=-bound, maxval=bound)
        b = jax.random.uniform(kb, (1, fan_out), jnp.float32,
                               minval=-bound, maxval=bound)
        params.append((w, b))
    return params


def reference_forward_mixed(x, params):
    """Mirrors the kernel's dtype handling (bf16 MXU operands, f32 acc)."""
    (w1, b1), (w2, b2), (w3, b3), (w4, b4) = params
    h = jnp.dot(x.astype(jnp.bfloat16), w1.astype(jnp.bfloat16),
                preferred_element_type=jnp.float32) + b1
    h = jnp.maximum(h, 0.0)
    h = jnp.dot(h.astype(jnp.bfloat16), w2.astype(jnp.bfloat16),
                preferred_element_type=jnp.float32) + b2
    h = jnp.maximum(h, 0.0)
    h = jnp.dot(h.astype(jnp.bfloat16), w3.astype(jnp.bfloat16),
                preferred_element_type=jnp.float32) + b3
    h = jnp.maximum(h, 0.0)
    z = jnp.sum(h * w4.reshape(1, -1), axis=-1, keepdims=True) + b4
    return jax.nn.sigmoid(z)


def reference_forward_f32(x, params):
    h = x
    for w, b in params[:-1]:
        h = jnp.maximum(h @ w + b, 0.0)
    w, b = params[-1]
    return jax.nn.sigmoid(h @ w + b)


if __name__ == "__main__":
    hidden_sizes = [128, 64, 32]
    input_size = 16
    output_size = 1
    batch = 16

    key = jax.random.PRNGKey(0)
    key, kx = jax.random.split(key)
    x = jax.random.normal(kx, (batch, input_size), jnp.float32)
    params = init_params(key, input_size, hidden_sizes, output_size)

    # Run 1: default tile (single grid step; tile clamps down to cover batch).
    out = jax.block_until_ready(neural_network_forward(x, params))
    assert out.shape == (batch, output_size)

    ref_mixed = reference_forward_mixed(x, params)
    ref_f32 = reference_forward_f32(x, params)
    assert jnp.allclose(out, ref_mixed, atol=2e-3, rtol=2e-3), \
        "mismatch vs mixed-precision reference"
    assert jnp.allclose(out, ref_f32, atol=2e-2, rtol=2e-2), \
        "mismatch vs f32 reference"

    # Run 2: multi-step grid with a non-divisible tail (no host-side pad):
    # 40 rows, 32-row tile -> grid of 2, second block overhangs by 24 rows.
    key, kx2 = jax.random.split(key)
    x2 = jax.random.normal(kx2, (40, input_size), jnp.float32)
    out2 = jax.block_until_ready(neural_network_forward(x2, params, tile_b=32))
    ref2 = reference_forward_mixed(x2, params)
    assert out2.shape == (40, output_size)
    assert jnp.allclose(out2, ref2, atol=2e-3, rtol=2e-3), \
        "mismatch on multi-tile grid with tail"

    print("KERNEL_OK")
</pallas_src>

<mosaic_0001>
module attributes {stable_mosaic.version = 11 : i64} {
  func.func @mlp_kernel(%arg0: i32, %arg1: memref<16x16xbf16, #tpu.memory_space<vmem>>, %arg2: memref<16x128xbf16, #tpu.memory_space<vmem>>, %arg3: memref<1x128xf32, #tpu.memory_space<vmem>>, %arg4: memref<128x64xbf16, #tpu.memory_space<vmem>>, %arg5: memref<1x64xf32, #tpu.memory_space<vmem>>, %arg6: memref<64x32xbf16, #tpu.memory_space<vmem>>, %arg7: memref<1x32xf32, #tpu.memory_space<vmem>>, %arg8: memref<1x32xf32, #tpu.memory_space<vmem>>, %arg9: memref<1x1xf32, #tpu.memory_space<vmem>>, %arg10: memref<16x1xf32, #tpu.memory_space<vmem>>) attributes {dimension_semantics = [#tpu.dimension_semantics<parallel>], iteration_bounds = array<i64: 1>, scalar_prefetch = 0 : i64, scratch_operands = 0 : i64, tpu.core_type = #tpu.core_type<tc>, window_params = [{transform_indices = @transform_0, window_bounds = array<i64: 16, 16>}, {pipeline_mode = #tpu.pipeline_mode<synchronous>, transform_indices = @transform_1, window_bounds = array<i64: 16, 128>}, {pipeline_mode = #tpu.pipeline_mode<synchronous>, transform_indices = @transform_2, window_bounds = array<i64: 1, 128>}, {pipeline_mode = #tpu.pipeline_mode<synchronous>, transform_indices = @transform_3, window_bounds = array<i64: 128, 64>}, {pipeline_mode = #tpu.pipeline_mode<synchronous>, transform_indices = @transform_4, window_bounds = array<i64: 1, 64>}, {pipeline_mode = #tpu.pipeline_mode<synchronous>, transform_indices = @transform_5, window_bounds = array<i64: 64, 32>}, {pipeline_mode = #tpu.pipeline_mode<synchronous>, transform_indices = @transform_6, window_bounds = array<i64: 1, 32>}, {pipeline_mode = #tpu.pipeline_mode<synchronous>, transform_indices = @transform_7, window_bounds = array<i64: 1, 32>}, {pipeline_mode = #tpu.pipeline_mode<synchronous>, transform_indices = @transform_8, window_bounds = array<i64: 1, 1>}, {transform_indices = @transform_9, window_bounds = array<i64: 16, 1>}]} {
    %c0 = arith.constant 0 : index
    %c0_0 = arith.constant 0 : index
    %0 = vector.load %arg1[%c0, %c0_0] : memref<16x16xbf16, #tpu.memory_space<vmem>>, vector<16x16xbf16>
    %c0_1 = arith.constant 0 : index
    %c0_2 = arith.constant 0 : index
    %1 = vector.load %arg2[%c0_1, %c0_2] : memref<16x128xbf16, #tpu.memory_space<vmem>>, vector<16x128xbf16>
    %cst = arith.constant dense<0.000000e+00> : vector<16x128xf32>
    %2 = tpu.matmul %0, %1, %cst {dimension_numbers = #tpu.dot_dimension_numbers<[1], [0], [0], [1], [0, 0, 1, 1], [], []>} : vector<16x16xbf16>, vector<16x128xbf16>, vector<16x128xf32> -> vector<16x128xf32>
    %c0_3 = arith.constant 0 : index
    %c0_4 = arith.constant 0 : index
    %3 = vector.load %arg3[%c0_3, %c0_4] : memref<1x128xf32, #tpu.memory_space<vmem>>, vector<1x128xf32>
    %4 = vector.broadcast %3 : vector<1x128xf32> to vector<16x128xf32>
    %5 = arith.addf %2, %4 : vector<16x128xf32>
    %cst_5 = arith.constant 0.000000e+00 : f32
    %6 = vector.broadcast %cst_5 : f32 to vector<16x128xf32>
    %7 = arith.maximumf %5, %6 : vector<16x128xf32>
    %8 = arith.truncf %7 : vector<16x128xf32> to vector<16x128xbf16>
    %c0_6 = arith.constant 0 : index
    %c0_7 = arith.constant 0 : index
    %9 = vector.load %arg4[%c0_6, %c0_7] : memref<128x64xbf16, #tpu.memory_space<vmem>>, vector<128x64xbf16>
    %cst_8 = arith.constant dense<0.000000e+00> : vector<16x64xf32>
    %10 = tpu.matmul %8, %9, %cst_8 {dimension_numbers = #tpu.dot_dimension_numbers<[1], [0], [0], [1], [0, 0, 1, 1], [], []>} : vector<16x128xbf16>, vector<128x64xbf16>, vector<16x64xf32> -> vector<16x64xf32>
    %c0_9 = arith.constant 0 : index
    %c0_10 = arith.constant 0 : index
    %11 = vector.load %arg5[%c0_9, %c0_10] : memref<1x64xf32, #tpu.memory_space<vmem>>, vector<1x64xf32>
    %12 = vector.broadcast %11 : vector<1x64xf32> to vector<16x64xf32>
    %13 = arith.addf %10, %12 : vector<16x64xf32>
    %cst_11 = arith.constant 0.000000e+00 : f32
    %14 = vector.broadcast %cst_11 : f32 to vector<16x64xf32>
    %15 = arith.maximumf %13, %14 : vector<16x64xf32>
    %16 = arith.truncf %15 : vector<16x64xf32> to vector<16x64xbf16>
    %c0_12 = arith.constant 0 : index
    %c0_13 = arith.constant 0 : index
    %17 = vector.load %arg6[%c0_12, %c0_13] : memref<64x32xbf16, #tpu.memory_space<vmem>>, vector<64x32xbf16>
    %cst_14 = arith.constant dense<0.000000e+00> : vector<16x32xf32>
    %18 = tpu.matmul %16, %17, %cst_14 {dimension_numbers = #tpu.dot_dimension_numbers<[1], [0], [0], [1], [0, 0, 1, 1], [], []>} : vector<16x64xbf16>, vector<64x32xbf16>, vector<16x32xf32> -> vector<16x32xf32>
    %c0_15 = arith.constant 0 : index
    %c0_16 = arith.constant 0 : index
    %19 = vector.load %arg7[%c0_15, %c0_16] : memref<1x32xf32, #tpu.memory_space<vmem>>, vector<1x32xf32>
    %20 = vector.broadcast %19 : vector<1x32xf32> to vector<16x32xf32>
    %21 = arith.addf %18, %20 : vector<16x32xf32>
    %cst_17 = arith.constant 0.000000e+00 : f32
    %22 = vector.broadcast %cst_17 : f32 to vector<16x32xf32>
    %23 = arith.maximumf %21, %22 : vector<16x32xf32>
    %c0_18 = arith.constant 0 : index
    %c0_19 = arith.constant 0 : index
    %24 = vector.load %arg8[%c0_18, %c0_19] : memref<1x32xf32, #tpu.memory_space<vmem>>, vector<1x32xf32>
    %25 = vector.broadcast %24 : vector<1x32xf32> to vector<16x32xf32>
    %26 = arith.mulf %23, %25 : vector<16x32xf32>
    %cst_20 = arith.constant dense<0.000000e+00> : vector<16xf32>
    %27 = vector.multi_reduction <add>, %26, %cst_20 [1] : vector<16x32xf32> to vector<16xf32>
    %28 = vector.shape_cast %27 : vector<16xf32> to vector<16x1xf32>
    %c0_21 = arith.constant 0 : index
    %c0_22 = arith.constant 0 : index
    %29 = vector.load %arg9[%c0_21, %c0_22] : memref<1x1xf32, #tpu.memory_space<vmem>>, vector<1x1xf32>
    %30 = vector.broadcast %29 : vector<1x1xf32> to vector<16x1xf32>
    %31 = arith.addf %28, %30 : vector<16x1xf32>
    %32 = arith.negf %31 : vector<16x1xf32>
    %33 = math.exp %32 : vector<16x1xf32>
    %cst_23 = arith.constant 1.000000e+00 : f32
    %34 = vector.broadcast %cst_23 : f32 to vector<16x1xf32>
    %35 = arith.addf %34, %33 : vector<16x1xf32>
    %36 = arith.divf %34, %35 : vector<16x1xf32>
    %c0_24 = arith.constant 0 : index
    %c0_25 = arith.constant 0 : index
    %37 = vector.load %arg10[%c0_24, %c0_25] : memref<16x1xf32, #tpu.memory_space<vmem>>, vector<16x1xf32>
    tpu.vector_store %arg10[%c0_24, %c0_25], %36 {strides = array<i32>} : memref<16x1xf32, #tpu.memory_space<vmem>>, vector<16x1xf32>,
    return
  }
  func.func @transform_0(%arg0: i32) -> (i32, i32) {
    %c0_i32 = arith.constant 0 : i32
    %c0_i32_0 = arith.constant 0 : i32
    return %arg0, %c0_i32 : i32, i32
  }
  func.func @transform_1(%arg0: i32) -> (i32, i32) {
    %c0_i32 = arith.constant 0 : i32
    %c0_i32_0 = arith.constant 0 : i32
    %c0_i32_1 = arith.constant 0 : i32
    return %c0_i32, %c0_i32_0 : i32, i32
  }
  func.func @transform_2(%arg0: i32) -> (i32, i32) {
    %c0_i32 = arith.constant 0 : i32
    %c0_i32_0 = arith.constant 0 : i32
    %c0_i32_1 = arith.constant 0 : i32
    return %c0_i32, %c0_i32_0 : i32, i32
  }
  func.func @transform_3(%arg0: i32) -> (i32, i32) {
    %c0_i32 = arith.constant 0 : i32
    %c0_i32_0 = arith.constant 0 : i32
    %c0_i32_1 = arith.constant 0 : i32
    return %c0_i32, %c0_i32_0 : i32, i32
  }
  func.func @transform_4(%arg0: i32) -> (i32, i32) {
    %c0_i32 = arith.constant 0 : i32
    %c0_i32_0 = arith.constant 0 : i32
    %c0_i32_1 = arith.constant 0 : i32
    return %c0_i32, %c0_i32_0 : i32, i32
  }
  func.func @transform_5(%arg0: i32) -> (i32, i32) {
    %c0_i32 = arith.constant 0 : i32
    %c0_i32_0 = arith.constant 0 : i32
    %c0_i32_1 = arith.constant 0 : i32
    return %c0_i32, %c0_i32_0 : i32, i32
  }
  func.func @transform_6(%arg0: i32) -> (i32, i32) {
    %c0_i32 = arith.constant 0 : i32
    %c0_i32_0 = arith.constant 0 : i32
    %c0_i32_1 = arith.constant 0 : i32
    return %c0_i32, %c0_i32_0 : i32, i32
  }
  func.func @transform_7(%arg0: i32) -> (i32, i32) {
    %c0_i32 = arith.constant 0 : i32
    %c0_i32_0 = arith.constant 0 : i32
    %c0_i32_1 = arith.constant 0 : i32
    return %c0_i32, %c0_i32_0 : i32, i32
  }
  func.func @transform_8(%arg0: i32) -> (i32, i32) {
    %c0_i32 = arith.constant 0 : i32
    %c0_i32_0 = arith.constant 0 : i32
    %c0_i32_1 = arith.constant 0 : i32
    return %c0_i32, %c0_i32_0 : i32, i32
  }
  func.func @transform_9(%arg0: i32) -> (i32, i32) {
    %c0_i32 = arith.constant 0 : i32
    %c0_i32_0 = arith.constant 0 : i32
    return %arg0, %c0_i32 : i32, i32
  }
}

</mosaic_0001>

<llo_original>
// kernel: tpu_custom_call.1
$region0: #{tpu_custom_call.1}
  #allocation0 [shape = 'u32[]', space=smem, size = 0x4, offset = 0x4, fixed_abs, tag = 'smem constant byte address 0x4 - core index']
  #allocation1 [shape = 'u32[144,128]{1,0:T(1,128)}', space=vmem, size = 0x12000, scoped, tag = 'internal scratch']
  #allocation2 [shape = 'f32[1,1]{1,0:T(1,128)S(1)}', space=vmem, size = 0x200, scoped, tag = 'scoped memory for tpu_custom_call.1']
  %s0 = inlined_call_operand.vmem [shape: bf16[16,16], index: 0, kind: input, shape index: {}]
  %s1 = inlined_call_operand.vmem [shape: bf16[16,128], index: 1, kind: input, shape index: {}]
  %s2 = inlined_call_operand.vmem [shape: f32[1,128], index: 2, kind: input, shape index: {}]
  %s3 = inlined_call_operand.vmem [shape: bf16[128,64], index: 3, kind: input, shape index: {}]
  %s4 = inlined_call_operand.vmem [shape: f32[1,64], index: 4, kind: input, shape index: {}]
  %s5 = inlined_call_operand.vmem [shape: bf16[64,32], index: 5, kind: input, shape index: {}]
  %s6 = inlined_call_operand.vmem [shape: f32[1,32], index: 6, kind: input, shape index: {}]
  %s7 = inlined_call_operand.vmem [shape: f32[1,32], index: 7, kind: input, shape index: {}]
  %s8 = inlined_call_operand.<no memory space> [shape: f32[1,1], index: 8, kind: input, shape index: {}]
  %s9 = inlined_call_operand.vmem [shape: f32[16,1], index: 9, kind: output, shape index: {}]
  %s10 = sld [smem:[#allocation0]]
  $region46: #{tpu_custom_call.1} parent=0
    _
  %s12 = ssub.s32 1, %s10
  %s13 = scalar_select 0, %s12, %s10
  %v14 = vstv %s8
  %15 = vst [vmem:[#allocation2] sm:$0x1] %v14
  // Predicated region
  $region2: #{tpu_custom_call.1} parent=0 // pred_check
    _
  $region3: #{tpu_custom_call.1} parent=0 // pred_check_branch
    %17 = sbr.rel (0) target = $region5
  $region4: #{tpu_custom_call.1} parent=0 // pred_region
    _
  $region5: #{tpu_custom_call.1} parent=0 // pred_fallthru
    _
  // Predicated region
  $region6: #{tpu_custom_call.1} parent=0 // pred_check
    _
  $region7: #{tpu_custom_call.1} parent=0 // pred_check_branch
    %19 = sbr.rel (0) target = $region9
  $region8: #{tpu_custom_call.1} parent=0 // pred_region
    _
  $region9: #{tpu_custom_call.1} parent=0 // pred_fallthru
    _
  // Predicated region
  $region10: #{tpu_custom_call.1} parent=0 // pred_check
    _
  $region11: #{tpu_custom_call.1} parent=0 // pred_check_branch
    %21 = sbr.rel (0) target = $region13
  $region12: #{tpu_custom_call.1} parent=0 // pred_region
    _
  $region13: #{tpu_custom_call.1} parent=0 // pred_fallthru
    _
  // Predicated region
  $region14: #{tpu_custom_call.1} parent=0 // pred_check
    _
  $region15: #{tpu_custom_call.1} parent=0 // pred_check_branch
    %23 = sbr.rel (0) target = $region17
  $region16: #{tpu_custom_call.1} parent=0 // pred_region
    _
  $region17: #{tpu_custom_call.1} parent=0 // pred_fallthru
    _
  // Predicated region
  $region18: #{tpu_custom_call.1} parent=0 // pred_check
    _
  $region19: #{tpu_custom_call.1} parent=0 // pred_check_branch
    %25 = sbr.rel (0) target = $region21
  $region20: #{tpu_custom_call.1} parent=0 // pred_region
    _
  $region21: #{tpu_custom_call.1} parent=0 // pred_fallthru
    _
  // Predicated region
  $region22: #{tpu_custom_call.1} parent=0 // pred_check
    _
  $region23: #{tpu_custom_call.1} parent=0 // pred_check_branch
    %27 = sbr.rel (0) target = $region25
  $region24: #{tpu_custom_call.1} parent=0 // pred_region
    _
  $region25: #{tpu_custom_call.1} parent=0 // pred_fallthru
    _
  // Predicated region
  $region26: #{tpu_custom_call.1} parent=0 // pred_check
    _
  $region27: #{tpu_custom_call.1} parent=0 // pred_check_branch
    %29 = sbr.rel (0) target = $region29
  $region28: #{tpu_custom_call.1} parent=0 // pred_region
    _
  $region29: #{tpu_custom_call.1} parent=0 // pred_fallthru
    _
  // Predicated region
  $region30: #{tpu_custom_call.1} parent=0 // pred_check
    _
  $region31: #{tpu_custom_call.1} parent=0 // pred_check_branch
    %31 = sbr.rel (0) target = $region33
  $region32: #{tpu_custom_call.1} parent=0 // pred_region
    _
  $region33: #{tpu_custom_call.1} parent=0 // pred_fallthru
    _
  // Predicated region
  $region34: #{tpu_custom_call.1} parent=0 // pred_check
    _
  $region35: #{tpu_custom_call.1} parent=0 // pred_check_branch
    %33 = sbr.rel (0) target = $region37
  $region36: #{tpu_custom_call.1} parent=0 // pred_region
    _
  $region37: #{tpu_custom_call.1} parent=0 // pred_fallthru
    _
  %v35 = vld [vmem:[%s0] sm:$0xf]
  %v36 = vld [vmem:[%s0 + $0x4] sm:$0xf]
  %v37 = vld [vmem:[%s1] sm:$0xf]
  %v38 = vld [vmem:[%s1 + $0x4] sm:$0xf]
  %v39 = vld [vmem:[%s2] sm:$0x1]
  %v41 = vlaneseq
  %v42 = vshrl.u32 %v41, 7
  %v43 = vsub.s32 0, %v42
  %v44 = vrot.slane %v39, %v43
  %v48 = vunpack.c.l.b16 %v35
  %v49 = vunpack.c.l.b16 %v36
  %v50 = vpack.c.b16 %v49, %v48
  %v53 = vunpack.c.l.b16 %v37
  %v54 = vunpack.c.l.b16 %v38
  %v55 = vpack.c.b16 %v54, %v53
  %vm57 = vcmask 130048
  %v59 = vsel %vm57, %v50, 0
  %61 = vmatprep.subr.bf16.mxu0 0
  %62 = vmatpush1.bf16.msra.mxu0 %v55
  %63 = vmatprep.subr.bf16.mxu0 0
  %64 = vmatpush1.bf16.msra.mxu0 0
  %65 = vmatprep.subr.bf16.mxu0 0
  %66 = vmatpush1.bf16.msra.mxu0 0
  %67 = vmatprep.subr.bf16.mxu0 0
  %68 = vmatpush1.bf16.msra.mxu0 0
  %69 = vmatprep.subr.bf16.mxu0 0
  %70 = vmatpush1.bf16.msra.mxu0 0
  %71 = vmatprep.subr.bf16.mxu0 0
  %72 = vmatpush1.bf16.msra.mxu0 0
  %73 = vmatprep.subr.bf16.mxu0 0
  %74 = vmatpush1.bf16.msra.mxu0 0
  %75 = vmatprep.subr.bf16.mxu0 0
  %76 = vmatpush1.bf16.msra.mxu0 0
  %77 = vmatprep.subr.bf16.mxu0 0
  %78 = vmatpush1.bf16.msra.mxu0 0
  %79 = vmatprep.subr.bf16.mxu0 0
  %80 = vmatpush1.bf16.msra.mxu0 0
  %81 = vmatprep.subr.bf16.mxu0 0
  %82 = vmatpush1.bf16.msra.mxu0 0
  %83 = vmatprep.subr.bf16.mxu0 0
  %84 = vmatpush1.bf16.msra.mxu0 0
  %85 = vmatprep.subr.bf16.mxu0 0
  %86 = vmatpush1.bf16.msra.mxu0 0
  %87 = vmatprep.subr.bf16.mxu0 0
  %88 = vmatpush1.bf16.msra.mxu0 0
  %89 = vmatprep.subr.bf16.mxu0 0
  %90 = vmatpush1.bf16.msra.mxu0 0
  %91 = vmatprep.subr.bf16.mxu0 0
  %92 = vmatpush1.bf16.msra.mxu0 0
  %93 = vmatprep.mubr.bf16.mxu0 0
  %94 = vmatmul.mubr.bf16.gmra.mrb[0].mxu0 %v59
  %v95 = vpop.f32.mrb[0].mxu0
  %v96 = vadd.f32 %v44, %v95
  %v97 = vpop.f32.mrb[0].mxu0
  %v98 = vpop.f32.mrb[0].mxu0
  %v99 = vadd.f32 %v44, %v98
  %v100 = vpop.f32.mrb[0].mxu0
  %101 = vdwg.mxu0
  %v102 = vmax.f32 %v96, 0.0
  %v103 = vmax.f32 %v99, 0.0
  %v104 = vpack.c.bf16 %v103, %v102
  %v105 = vld [vmem:[%s3] sm:$0xf]
  %v106 = vld [vmem:[%s3 + $0x4] sm:$0xf]
  %v107 = vld [vmem:[%s3 + $0x8] sm:$0xf]
  %v108 = vld [vmem:[%s3 + $0xc] sm:$0xf]
  %v109 = vld [vmem:[%s3 + $0x10] sm:$0xf]
  %v110 = vld [vmem:[%s3 + $0x14] sm:$0xf]
  %v111 = vld [vmem:[%s3 + $0x18] sm:$0xf]
  %v112 = vld [vmem:[%s3 + $0x1c] sm:$0xf]
  %v113 = vld [vmem:[%s3 + $0x20] sm:$0xf]
  %v114 = vld [vmem:[%s3 + $0x24] sm:$0xf]
  %v115 = vld [vmem:[%s3 + $0x28] sm:$0xf]
  %v116 = vld [vmem:[%s3 + $0x2c] sm:$0xf]
  %v117 = vld [vmem:[%s3 + $0x30] sm:$0xf]
  %v118 = vld [vmem:[%s3 + $0x34] sm:$0xf]
  %v119 = vld [vmem:[%s3 + $0x38] sm:$0xf]
  %v120 = vld [vmem:[%s3 + $0x3c] sm:$0xf]
  %v121 = vld [vmem:[%s4] sm:$0x1]
  %v123 = vlaneseq
  %v124 = vshrl.u32 %v123, 7
  %v125 = vsub.s32 0, %v124
  %v126 = vrot.slane %v121, %v125
  %v144 = vunpack.c.l.b16 %v105
  %v145 = vunpack.c.l.b16 %v106
  %v146 = vunpack.c.l.b16 %v107
  %v147 = vunpack.c.l.b16 %v108
  %v148 = vunpack.c.l.b16 %v109
  %v149 = vunpack.c.l.b16 %v110
  %v150 = vunpack.c.l.b16 %v111
  %v151 = vunpack.c.l.b16 %v112
  %v152 = vunpack.c.l.b16 %v113
  %v153 = vunpack.c.l.b16 %v114
  %v154 = vunpack.c.l.b16 %v115
  %v155 = vunpack.c.l.b16 %v116
  %v156 = vunpack.c.l.b16 %v117
  %v157 = vunpack.c.l.b16 %v118
  %v158 = vunpack.c.l.b16 %v119
  %v159 = vunpack.c.l.b16 %v120
  %v160 = vpack.c.b16 %v145, %v144
  %v161 = vpack.c.b16 %v147, %v146
  %v162 = vpack.c.b16 %v149, %v148
  %v163 = vpack.c.b16 %v151, %v150
  %v164 = vpack.c.b16 %v153, %v152
  %v165 = vpack.c.b16 %v155, %v154
  %v166 = vpack.c.b16 %v157, %v156
  %v167 = vpack.c.b16 %v159, %v158
  %176 = vmatprep.subr.bf16.mxu0 0
  %177 = vmatpush1.bf16.msra.mxu0 %v160
  %178 = vmatprep.subr.bf16.mxu0 0
  %179 = vmatpush1.bf16.msra.mxu0 %v161
  %180 = vmatprep.subr.bf16.mxu0 0
  %181 = vmatpush1.bf16.msra.mxu0 %v162
  %182 = vmatprep.subr.bf16.mxu0 0
  %183 = vmatpush1.bf16.msra.mxu0 %v163
  %184 = vmatprep.subr.bf16.mxu0 0
  %185 = vmatpush1.bf16.msra.mxu0 %v164
  %186 = vmatprep.subr.bf16.mxu0 0
  %187 = vmatpush1.bf16.msra.mxu0 %v165
  %188 = vmatprep.subr.bf16.mxu0 0
  %189 = vmatpush1.bf16.msra.mxu0 %v166
  %190 = vmatprep.subr.bf16.mxu0 0
  %191 = vmatpush1.bf16.msra.mxu0 %v167
  %192 = vmatprep.subr.bf16.mxu0 0
  %193 = vmatpush1.bf16.msra.mxu0 0
  %194 = vmatprep.subr.bf16.mxu0 0
  %195 = vmatpush1.bf16.msra.mxu0 0
  %196 = vmatprep.subr.bf16.mxu0 0
  %197 = vmatpush1.bf16.msra.mxu0 0
  %198 = vmatprep.subr.bf16.mxu0 0
  %199 = vmatpush1.bf16.msra.mxu0 0
  %200 = vmatprep.subr.bf16.mxu0 0
  %201 = vmatpush1.bf16.msra.mxu0 0
  %202 = vmatprep.subr.bf16.mxu0 0
  %203 = vmatpush1.bf16.msra.mxu0 0
  %204 = vmatprep.subr.bf16.mxu0 0
  %205 = vmatpush1.bf16.msra.mxu0 0
  %206 = vmatprep.subr.bf16.mxu0 0
  %207 = vmatpush1.bf16.msra.mxu0 0
  %208 = vmatprep.mubr.bf16.mxu0 0
  %209 = vmatmul.mubr.bf16.gmra.mrb[0].mxu0 %v104
  %v210 = vpop.f32.mrb[0].mxu0
  %v211 = vadd.f32 %v126, %v210
  %v212 = vpop.f32.mrb[0].mxu0
  %v213 = vpop.f32.mrb[0].mxu0
  %v214 = vadd.f32 %v126, %v213
  %v215 = vpop.f32.mrb[0].mxu0
  %216 = vdwg.mxu0
  %v217 = vmax.f32 %v211, 0.0
  %v218 = vmax.f32 %v214, 0.0
  %v219 = vpack.c.bf16 %v218, %v217
  %v220 = vld [vmem:[%s5] sm:$0xf]
  %v221 = vld [vmem:[%s5 + $0x4] sm:$0xf]
  %v222 = vld [vmem:[%s5 + $0x8] sm:$0xf]
  %v223 = vld [vmem:[%s5 + $0xc] sm:$0xf]
  %v224 = vld [vmem:[%s5 + $0x10] sm:$0xf]
  %v225 = vld [vmem:[%s5 + $0x14] sm:$0xf]
  %v226 = vld [vmem:[%s5 + $0x18] sm:$0xf]
  %v227 = vld [vmem:[%s5 + $0x1c] sm:$0xf]
  %v228 = vld [vmem:[%s6] sm:$0x1]
  %v230 = vlaneseq
  %v231 = vshrl.u32 %v230, 7
  %v232 = vsub.s32 0, %v231
  %v233 = vrot.slane %v228, %v232
  %v243 = vunpack.c.l.b16 %v220
  %v244 = vunpack.c.l.b16 %v221
  %v245 = vunpack.c.l.b16 %v222
  %v246 = vunpack.c.l.b16 %v223
  %v247 = vunpack.c.l.b16 %v224
  %v248 = vunpack.c.l.b16 %v225
  %v249 = vunpack.c.l.b16 %v226
  %v250 = vunpack.c.l.b16 %v227
  %v251 = vpack.c.b16 %v244, %v243
  %v252 = vpack.c.b16 %v246, %v245
  %v253 = vpack.c.b16 %v248, %v247
  %v254 = vpack.c.b16 %v250, %v249
  %vm259 = vcmask 523264
  %v261 = vsel %vm259, %v219, 0
  %263 = vmatprep.subr.bf16.mxu0 0
  %264 = vmatpush1.bf16.msra.mxu0 %v251
  %265 = vmatprep.subr.bf16.mxu0 0
  %266 = vmatpush1.bf16.msra.mxu0 %v252
  %267 = vmatprep.subr.bf16.mxu0 0
  %268 = vmatpush1.bf16.msra.mxu0 %v253
  %269 = vmatprep.subr.bf16.mxu0 0
  %270 = vmatpush1.bf16.msra.mxu0 %v254
  %271 = vmatprep.subr.bf16.mxu0 0
  %272 = vmatpush1.bf16.msra.mxu0 0
  %273 = vmatprep.subr.bf16.mxu0 0
  %274 = vmatpush1.bf16.msra.mxu0 0
  %275 = vmatprep.subr.bf16.mxu0 0
  %276 = vmatpush1.bf16.msra.mxu0 0
  %277 = vmatprep.subr.bf16.mxu0 0
  %278 = vmatpush1.bf16.msra.mxu0 0
  %279 = vmatprep.subr.bf16.mxu0 0
  %280 = vmatpush1.bf16.msra.mxu0 0
  %281 = vmatprep.subr.bf16.mxu0 0
  %282 = vmatpush1.bf16.msra.mxu0 0
  %283 = vmatprep.subr.bf16.mxu0 0
  %284 = vmatpush1.bf16.msra.mxu0 0
  %285 = vmatprep.subr.bf16.mxu0 0
  %286 = vmatpush1.bf16.msra.mxu0 0
  %287 = vmatprep.subr.bf16.mxu0 0
  %288 = vmatpush1.bf16.msra.mxu0 0
  %289 = vmatprep.subr.bf16.mxu0 0
  %290 = vmatpush1.bf16.msra.mxu0 0
  %291 = vmatprep.subr.bf16.mxu0 0
  %292 = vmatpush1.bf16.msra.mxu0 0
  %293 = vmatprep.subr.bf16.mxu0 0
  %294 = vmatpush1.bf16.msra.mxu0 0
  %295 = vmatprep.mubr.bf16.mxu0 0
  %296 = vmatmul.mubr.bf16.gmra.mrb[0].mxu0 %v261
  %v297 = vpop.f32.mrb[0].mxu0
  %v298 = vadd.f32 %v233, %v297
  %v299 = vpop.f32.mrb[0].mxu0
  %v300 = vpop.f32.mrb[0].mxu0
  %v301 = vadd.f32 %v233, %v300
  %v302 = vpop.f32.mrb[0].mxu0
  %303 = vdwg.mxu0
  %v304 = vmax.f32 %v298, 0.0
  %v305 = vmax.f32 %v301, 0.0
  %v306 = vld [vmem:[%s7] sm:$0x1]
  %v308 = vlaneseq
  %v309 = vshrl.u32 %v308, 7
  %v310 = vsub.s32 0, %v309
  %v311 = vrot.slane %v306, %v310
  %v313 = vmul.f32 %v304, %v311
  %v314 = vmul.f32 %v305, %v311
  %vm315 = vcmask 261120
  %v316 = vsel %vm315, %v313, 0.0
  %317 = vadd.xlane.f32.xlu0 %v316
  %v318 = vpop.xlane.xlu0 %317
  %v319 = vsel %vm315, %v314, 0.0
  %320 = vadd.xlane.f32.xlu0 %v319
  %v321 = vpop.xlane.xlu0 %320
  %v322 = vld [vmem:[#allocation2] sm:$0x1]
  %v324 = vlaneseq
  %v325 = vshrl.u32 %v324, 7
  %v326 = vsub.s32 0, %v325
  %v327 = vrot.slane %v322, %v326
  %v329 = vadd.f32 %v318, %v327
  %v330 = vadd.f32 %v321, %v327
  %v331 = vxor.u32 %v329, 2147483648
  %v332 = vxor.u32 %v330, 2147483648
  %v333 = vmul.f32 %v331, 1.442695
  %v334 = vpow.pop %v333
  %v335 = vmul.f32 %v332, 1.442695
  %v336 = vpow.pop %v335
  %v337 = vadd.f32 %v334, 1.0
  %v338 = vadd.f32 %v336, 1.0
  %v339 = vrcp.pop %v337
  %v340 = vmul.f32 1.0, %v339
  %v341 = vrcp.pop %v338
  %v342 = vmul.f32 1.0, %v341
  %vm343 = vcmask 7168
  %344 = vst.msk [vmem:[%s9] sm:$0xff] %vm343, %v340
  %345 = vst.msk [vmem:[%s9 + $0x8] sm:$0xff] %vm343, %v342
  // Predicated region
  $region38: #{tpu_custom_call.1} parent=0 // pred_check
    _
  $region39: #{tpu_custom_call.1} parent=0 // pred_check_branch
    %347 = sbr.rel (0) target = $region41
  $region40: #{tpu_custom_call.1} parent=0 // pred_region
    _
  $region41: #{tpu_custom_call.1} parent=0 // pred_fallthru
    _
  // Predicated region
  $region42: #{tpu_custom_call.1} parent=0 // pred_check
    _
  $region43: #{tpu_custom_call.1} parent=0 // pred_check_branch
    %349 = sbr.rel (0) target = $region45
  $region44: #{tpu_custom_call.1} parent=0 // pred_region
    _
  $region45: #{tpu_custom_call.1} parent=0 // pred_fallthru
    _

</llo_original>
